<compile_context>
chip_gen: v7x
topology: tpu7x:2x2x1
jax: 0.10.0
libtpu: 0.0.40
codegen_flags: <defaults>
</compile_context>

<pallas_src>
import jax
import jax.numpy as jnp
from jax.experimental import pallas as pl
from jax.experimental.pallas import tpu as pltpu

EPS = 1e-5

# Per-block f32 element budget for the (NB, TC, Lp) x/out tiles (~1 MiB each).
_BLOCK_ELEM_BUDGET = 256 * 1024


def _pick_tile(dim, unit, max_tile):
    """Largest divisor of `dim` that is a multiple of `unit` and <= max_tile."""
    best = None
    d = unit
    cap = min(dim, max_tile)
    while d <= cap:
        if dim % d == 0:
            best = d
        d += unit
    return best if best is not None else dim


def _pick_batch_tile(n, max_tile):
    """Largest divisor of n that is <= max_tile (>= 1)."""
    best = 1
    for d in range(1, min(n, max(1, max_tile)) + 1):
        if n % d == 0:
            best = d
    return best


def _make_spadain_kernel(nb, tc, l_true, l_pad):
    needs_mask = l_pad != l_true
    inv_l = 1.0 / float(l_true)

    def kernel(x_ref, a_ref, wb_ref, out_ref):
        # x_ref:   (NB, TC, Lp)       feature-map tile (zero-padded on C/L pads)
        # a_ref:   (NB, In+1, Lp)     conditioning tile, last row == 1 (bias fold)
        # wb_ref:  (2*TC, In+1)       [conv_weight ; conv_bias] aug. weights, this C-tile
        # out_ref: (NB, TC, Lp)
        wb = wb_ref[...].astype(jnp.float32)

        if needs_mask:
            lane = jax.lax.broadcasted_iota(jnp.int32, (tc, l_pad), 1)
            mask = lane < l_true

        for bi in range(nb):  # static unroll over fused batch elements
            x = x_ref[bi].astype(jnp.float32)          # (TC, Lp)
            a = a_ref[bi].astype(jnp.float32)          # (In+1, Lp)

            # InstanceNorm1d (affine=False): stats over the TRUE length only.
            # Pads are zero, so sum(x)/L_true is exact; the variance pass masks
            # the centered pad lanes (they would otherwise contribute mean^2).
            mean = jnp.sum(x, axis=-1, keepdims=True) * inv_l          # (TC, 1)
            centered = x - mean
            if needs_mask:
                sq = jnp.where(mask, centered * centered, 0.0)
            else:
                sq = centered * centered
            var = jnp.sum(sq, axis=-1, keepdims=True) * inv_l          # (TC, 1)
            inv = jax.lax.rsqrt(var + EPS)                             # (TC, 1)

            # Both 1x1 convs (bias folded via the ones row of `a`) in one MXU dot.
            wbm = jnp.dot(wb, a, preferred_element_type=jnp.float32)   # (2*TC, Lp)
            w = wbm[:tc]                                               # (TC, Lp)
            b = wbm[tc:]                                               # (TC, Lp)

            # out = w * x_norm + b, without materializing x_norm.
            out_ref[bi] = ((w * inv) * centered + b).astype(out_ref.dtype)

    return kernel


def spadain(x, addition, w_weight, w_bias, b_weight, b_bias):
    """x: (N, C, L), addition: (N, In, L); conv params shaped (C, In) / (C, 1)."""
    N, C, L = x.shape
    In = addition.shape[1]

    # Fold the kernel-size-1 conv biases into the weights as an extra column,
    # matched by a ones row appended to `addition`.
    ww_aug = jnp.concatenate([w_weight, w_bias], axis=1)          # (C, In+1)
    bw_aug = jnp.concatenate([b_weight, b_bias], axis=1)          # (C, In+1)
    ones = jnp.ones((N, 1, L), addition.dtype)
    a_aug = jnp.concatenate([addition, ones], axis=1)             # (N, In+1, L)

    # ---- padding for lane/sublane density -------------------------------
    Lp = ((L + 127) // 128) * 128 if L % 128 else L
    Cp = ((C + 7) // 8) * 8 if C % 8 else C
    pad_c, pad_l = Cp - C, Lp - L

    x_in = jnp.pad(x, ((0, 0), (0, pad_c), (0, pad_l))) if (pad_c or pad_l) else x
    a_in = jnp.pad(a_aug, ((0, 0), (0, 0), (0, pad_l))) if pad_l else a_aug
    ww_p = jnp.pad(ww_aug, ((0, pad_c), (0, 0))) if pad_c else ww_aug
    bw_p = jnp.pad(bw_aug, ((0, pad_c), (0, 0))) if pad_c else bw_aug

    # ---- tile selection --------------------------------------------------
    # Channel tile: multiple of 8 dividing Cp, capped by the VMEM element budget.
    max_tc = max(8, _BLOCK_ELEM_BUDGET // max(Lp, 1))
    TC = _pick_tile(Cp, 8, max_tc)
    # Batch tile: fuse batch elements while the budget allows (amortizes the
    # ~0.35us/step grid overhead when C*L is small).
    NB = _pick_batch_tile(N, _BLOCK_ELEM_BUDGET // max(max(TC, In + 1) * Lp, 1))
    # v7x: make sure the parallel grid can split across 2 TensorCores.
    if (N // NB) * (Cp // TC) < 2:
        if Cp // TC == 1 and TC >= 16 and TC % 16 == 0:
            TC = TC // 2
        elif NB > 1:
            NB = _pick_batch_tile(N, NB // 2)
    # TODO(synk): very long L where even TC=8 exceeds the budget would need
    # L-tiling plus a cross-tile sum/sumsq accumulator; not needed here.

    grid = (N // NB, Cp // TC)
    n_ct = Cp // TC

    # Stack [conv_weight ; conv_bias] augmented weights per channel-tile so the
    # kernel does a single (2*TC, In+1) @ (In+1, Lp) dot per batch element.
    wb_stacked = jnp.concatenate(
        [ww_p.reshape(n_ct, TC, In + 1), bw_p.reshape(n_ct, TC, In + 1)],
        axis=1)                                                   # (n_ct, 2*TC, In+1)

    kernel = _make_spadain_kernel(NB, TC, L, Lp)

    out = pl.pallas_call(
        kernel,
        out_shape=jax.ShapeDtypeStruct((N, Cp, Lp), x.dtype),
        grid_spec=pltpu.PrefetchScalarGridSpec(
            num_scalar_prefetch=0,
            grid=grid,
            in_specs=[
                pl.BlockSpec((NB, TC, Lp), lambda nb, c: (nb, c, 0)),       # x
                pl.BlockSpec((NB, In + 1, Lp), lambda nb, c: (nb, 0, 0)),   # addition (+ones)
                pl.BlockSpec((None, 2 * TC, In + 1), lambda nb, c: (c, 0, 0)),  # stacked weights
            ],
            out_specs=pl.BlockSpec((NB, TC, Lp), lambda nb, c: (nb, c, 0)),
        ),
        compiler_params=pltpu.CompilerParams(
            dimension_semantics=("parallel", "parallel"),
            vmem_limit_bytes=32 * 1024 * 1024),
    )(x_in, a_in, wb_stacked)

    if pad_c or pad_l:
        out = out[:, :C, :L]
    return out


def spadain_reference(x, addition, w_weight, w_bias, b_weight, b_bias):
    """Pure-JAX reference mirroring the PyTorch forward."""
    mean = jnp.mean(x, axis=-1, keepdims=True)
    var = jnp.mean((x - mean) ** 2, axis=-1, keepdims=True)
    x_norm = (x - mean) / jnp.sqrt(var + EPS)
    w = jnp.einsum("ci,nil->ncl", w_weight, addition) + w_bias[None, :, :]
    b = jnp.einsum("ci,nil->ncl", b_weight, addition) + b_bias[None, :, :]
    return w * x_norm + b


if __name__ == "__main__":
    # Small shapes consistent with the module: SPAdaIN(InstanceNorm1d, input_nc=3, planes=4)
    N, In, C, L = 2, 3, 4, 16

    key = jax.random.PRNGKey(0)
    kx, ka, k1, k2, k3, k4 = jax.random.split(key, 6)

    x = jax.random.normal(kx, (N, C, L), dtype=jnp.float32)
    addition = jax.random.normal(ka, (N, In, L), dtype=jnp.float32)

    # Deterministic Conv1d(kernel=1) parameters (PyTorch-like uniform init scale).
    bound = 1.0 / jnp.sqrt(jnp.float32(In))
    w_weight = jax.random.uniform(k1, (C, In), jnp.float32, -bound, bound)
    w_bias = jax.random.uniform(k2, (C, 1), jnp.float32, -bound, bound)
    b_weight = jax.random.uniform(k3, (C, In), jnp.float32, -bound, bound)
    b_bias = jax.random.uniform(k4, (C, 1), jnp.float32, -bound, bound)

    out = spadain(x, addition, w_weight, w_bias, b_weight, b_bias)
    out = jax.block_until_ready(out)

    ref = spadain_reference(x, addition, w_weight, w_bias, b_weight, b_bias)
    assert out.shape == (N, C, L)
    assert jnp.allclose(out, ref, atol=1e-5, rtol=1e-5), "mismatch vs reference"

    print("KERNEL_OK")
</pallas_src>

<mosaic_0001>
module attributes {stable_mosaic.version = 11 : i64} {
  func.func @kernel(%arg0: i32, %arg1: i32, %arg2: memref<1x8x128xf32, #tpu.memory_space<vmem>>, %arg3: memref<1x4x128xf32, #tpu.memory_space<vmem>>, %arg4: memref<1x16x4xf32, #tpu.memory_space<vmem>>, %arg5: memref<1x8x128xf32, #tpu.memory_space<vmem>>) attributes {dimension_semantics = [#tpu.dimension_semantics<parallel>, #tpu.dimension_semantics<parallel>], iteration_bounds = array<i64: 2, 1>, scalar_prefetch = 0 : i64, scratch_operands = 0 : i64, tpu.core_type = #tpu.core_type<tc>, window_params = [{transform_indices = @transform_0, window_bounds = array<i64: 1, 8, 128>}, {transform_indices = @transform_1, window_bounds = array<i64: 1, 4, 128>}, {transform_indices = @transform_2, window_bounds = array<i64: 1, 16, 4>}, {transform_indices = @transform_3, window_bounds = array<i64: 1, 8, 128>}]} {
    %c0 = arith.constant 0 : index
    %c0_0 = arith.constant 0 : index
    %c0_1 = arith.constant 0 : index
    %0 = vector.load %arg4[%c0, %c0_0, %c0_1] : memref<1x16x4xf32, #tpu.memory_space<vmem>>, vector<1x16x4xf32>
    %1 = vector.shape_cast %0 : vector<1x16x4xf32> to vector<16x4xf32>
    %2 = tpu.iota {dimensions = array<i32: 1>} : vector<8x128xi32>
    %c16_i32 = arith.constant 16 : i32
    %3 = vector.broadcast %c16_i32 : i32 to vector<8x128xi32>
    %4 = arith.cmpi slt, %2, %3 : vector<8x128xi32>
    %c0_2 = arith.constant 0 : index
    %c0_3 = arith.constant 0 : index
    %c0_4 = arith.constant 0 : index
    %5 = vector.load %arg2[%c0_2, %c0_3, %c0_4] : memref<1x8x128xf32, #tpu.memory_space<vmem>>, vector<1x8x128xf32>
    %6 = vector.shape_cast %5 : vector<1x8x128xf32> to vector<8x128xf32>
    %c0_5 = arith.constant 0 : index
    %c0_6 = arith.constant 0 : index
    %c0_7 = arith.constant 0 : index
    %7 = vector.load %arg3[%c0_5, %c0_6, %c0_7] : memref<1x4x128xf32, #tpu.memory_space<vmem>>, vector<1x4x128xf32>
    %8 = vector.shape_cast %7 : vector<1x4x128xf32> to vector<4x128xf32>
    %cst = arith.constant dense<0.000000e+00> : vector<8xf32>
    %9 = vector.multi_reduction <add>, %6, %cst [1] : vector<8x128xf32> to vector<8xf32>
    %10 = vector.shape_cast %9 : vector<8xf32> to vector<8x1xf32>
    %cst_8 = arith.constant 6.250000e-02 : f32
    %11 = vector.broadcast %cst_8 : f32 to vector<8x1xf32>
    %12 = arith.mulf %10, %11 : vector<8x1xf32>
    %13 = vector.broadcast %12 : vector<8x1xf32> to vector<8x128xf32>
    %14 = arith.subf %6, %13 : vector<8x128xf32>
    %15 = arith.mulf %14, %14 : vector<8x128xf32>
    %cst_9 = arith.constant 0.000000e+00 : f32
    %16 = vector.broadcast %cst_9 : f32 to vector<8x128xf32>
    %17 = arith.select %4, %15, %16 : vector<8x128xi1>, vector<8x128xf32>
    %cst_10 = arith.constant dense<0.000000e+00> : vector<8xf32>
    %18 = vector.multi_reduction <add>, %17, %cst_10 [1] : vector<8x128xf32> to vector<8xf32>
    %19 = vector.shape_cast %18 : vector<8xf32> to vector<8x1xf32>
    %cst_11 = arith.constant 6.250000e-02 : f32
    %20 = vector.broadcast %cst_11 : f32 to vector<8x1xf32>
    %21 = arith.mulf %19, %20 : vector<8x1xf32>
    %cst_12 = arith.constant 9.99999974E-6 : f32
    %22 = vector.broadcast %cst_12 : f32 to vector<8x1xf32>
    %23 = arith.addf %21, %22 : vector<8x1xf32>
    %24 = math.rsqrt %23 : vector<8x1xf32>
    %cst_13 = arith.constant dense<0.000000e+00> : vector<16x128xf32>
    %25 = tpu.matmul %1, %8, %cst_13 {dimension_numbers = #tpu.dot_dimension_numbers<[1], [0], [0], [1], [0, 0, 1, 1], [], []>} : vector<16x4xf32>, vector<4x128xf32>, vector<16x128xf32> -> vector<16x128xf32>
    %26 = vector.extract_strided_slice %25 {offsets = [0, 0], sizes = [8, 128], strides = [1, 1]} : vector<16x128xf32> to vector<8x128xf32>
    %27 = vector.extract_strided_slice %25 {offsets = [8, 0], sizes = [8, 128], strides = [1, 1]} : vector<16x128xf32> to vector<8x128xf32>
    %28 = vector.broadcast %24 : vector<8x1xf32> to vector<8x128xf32>
    %29 = arith.mulf %26, %28 : vector<8x128xf32>
    %30 = arith.mulf %29, %14 : vector<8x128xf32>
    %31 = arith.addf %30, %27 : vector<8x128xf32>
    %c0_14 = arith.constant 0 : index
    %c0_15 = arith.constant 0 : index
    %c0_16 = arith.constant 0 : index
    %32 = vector.load %arg5[%c0_14, %c0_15, %c0_16] : memref<1x8x128xf32, #tpu.memory_space<vmem>>, vector<1x8x128xf32>
    %33 = vector.shape_cast %32 : vector<1x8x128xf32> to vector<8x128xf32>
    %34 = vector.shape_cast %31 : vector<8x128xf32> to vector<1x8x128xf32>
    tpu.vector_store %arg5[%c0_14, %c0_15, %c0_16], %34 {strides = array<i32>} : memref<1x8x128xf32, #tpu.memory_space<vmem>>, vector<1x8x128xf32>,
    return
  }
  func.func @transform_0(%arg0: i32, %arg1: i32) -> (i32, i32, i32) {
    %c0_i32 = arith.constant 0 : i32
    %c0_i32_0 = arith.constant 0 : i32
    return %arg0, %arg1, %c0_i32 : i32, i32, i32
  }
  func.func @transform_1(%arg0: i32, %arg1: i32) -> (i32, i32, i32) {
    %c0_i32 = arith.constant 0 : i32
    %c0_i32_0 = arith.constant 0 : i32
    %c0_i32_1 = arith.constant 0 : i32
    return %arg0, %c0_i32, %c0_i32_0 : i32, i32, i32
  }
  func.func @transform_2(%arg0: i32, %arg1: i32) -> (i32, i32, i32) {
    %c0_i32 = arith.constant 0 : i32
    %c0_i32_0 = arith.constant 0 : i32
    %c0_i32_1 = arith.constant 0 : i32
    return %arg1, %c0_i32, %c0_i32_0 : i32, i32, i32
  }
  func.func @transform_3(%arg0: i32, %arg1: i32) -> (i32, i32, i32) {
    %c0_i32 = arith.constant 0 : i32
    %c0_i32_0 = arith.constant 0 : i32
    return %arg0, %arg1, %c0_i32 : i32, i32, i32
  }
}

</mosaic_0001>

<llo_original>
// kernel: tpu_custom_call.1
$region0: #{tpu_custom_call.1}
  #allocation0 [shape = 'u32[]', space=smem, size = 0x4, offset = 0x4, fixed_abs, tag = 'smem constant byte address 0x4 - core index']
  #allocation1 [shape = 'u32[144,128]{1,0:T(1,128)}', space=vmem, size = 0x12000, scoped, tag = 'internal scratch']
  %s0 = inlined_call_operand.vmem [shape: f32[2,8,128], index: 0, kind: input, shape index: {}]
  %s1 = inlined_call_operand.hbm [shape: f32[2,4,128], index: 1, kind: input, shape index: {}]
  %s2 = inlined_call_operand.vmem [shape: f32[1,16,4], index: 2, kind: input, shape index: {}]
  %s3 = inlined_call_operand.hbm [shape: f32[2,8,128], index: 3, kind: output, shape index: {}]
  %s4 = sld [smem:[#allocation0]]
  $region49: #{tpu_custom_call.1} parent=0
    _
  %s6 = ssub.s32 1, %s4
  %s7 = scalar_select 0, %s6, %s4
  $region1: #{tpu_custom_call.1} parent=0
    #allocation2 [shape = 'u8[4096]{0}', space=vmem, size = 0x1000, scoped, tag = 'input window, operand 1']
    #allocation3 [shape = 's32[2]{0}', space=sflag, size = 0x8, scoped, tag = 'scoped memory for tpu_custom_call.1']
    #allocation4 [shape = 's32[2]{0}', space=sflag, size = 0x8, scoped, tag = 'scoped memory for tpu_custom_call.1']
    #allocation5 [shape = 'u8[8192]{0}', space=vmem, size = 0x2000, scoped, tag = 'output window, operand 0']
    %8 = vsyncpa [#allocation3], 0
    %s9 = scalar_lea.sflag [#allocation3], 1
    %10 = vsyncpa %s9, 0
    %11 = vsyncpa [#allocation4], 0
    %s12 = scalar_lea.sflag [#allocation4], 1
    %13 = vsyncpa %s12, 0
    loop: start=0, step=1, limit=4
    $region2: #{tpu_custom_call.1} parent=1 // loop_pre_header
      _
    $region3: #{tpu_custom_call.1} parent=1 // loop_header
      %s15 = sphi 0, %s19
      %p16 = scmp.ge.s32.totalorder %s15, 4
      %s22 = sphi 0, %s34
      %s23 = sphi 0, %s30
      %s24 = sphi 0, %s22
      %s25 = sphi 0, %s23
      %s26 = sphi 0, %s24
      %s27 = sphi 0, %s25
      %s39 = sphi 0, %s41
      %s42 = sphi 0, %s39
      %s43 = sphi 0, %s42
      %s59 = sphi 0, %s43
      %s65 = sphi 0, %s67
      %s68 = sphi 0, %s65
      %s69 = sphi 0, %s68
      %s85 = sphi 0, %s69
      %s91 = sphi 0, %s93
      %s94 = sphi 0, %s91
      %s95 = sphi 0, %s94
      %s111 = sphi 0, %s95
      %s119 = sphi 0, %s121
      %s122 = sphi 0, %s119
      %s123 = sphi 0, %s122
      %s139 = sphi 0, %s123
    $region4: #{tpu_custom_call.1} parent=1 // loop_header_branch
      %18 = sbr.rel (%p16) target = $region8
    $region5: #{tpu_custom_call.1} parent=1 // loop_body
      %s20 = ssub.s32 %s15, 1
      %s21 = ssub.s32 %s15, 2
      %s28 = sadd.s32 1, %s23
      %p29 = scmp.ge.s32.totalorder %s28, 1
      %s30 = scalar_select %p29, 0, %s28
      %s31 = sadd.s32 1, %s22
      %s32 = scalar_select %p29, %s31, %s22
      %p33 = scmp.ge.s32.totalorder %s32, 2
      %s34 = scalar_select %p33, 0, %s32
      %s35 = ssub.s32 %s22, %s34
      %s36 = ssub.s32 %s23, %s30
      %s37 = sor.u32 %s35, %s36
      %p38 = scmp.eq.s32.totalorder %s37, 0
      %s40 = sadd.s32 %s39, 1
      %s41 = scalar_select %p38, %s39, %s40
      %p44 = pneg %p38
      %p45 = scmp.eq.s32.totalorder %s15, 1
      %p46 = por %p44, %p45
      %p47 = scmp.ne.s32.totalorder %s39, %s42
      %p48 = scmp.eq.s32.totalorder %s15, 0
      %p49 = por %p47, %p48
      %p50 = scmp.ne.s32.totalorder %s39, %s42
      %p51 = scmp.eq.s32.totalorder %s20, 1
      %p52 = por %p50, %p51
      %p53 = scmp.ne.s32.totalorder %s42, %s43
      %p54 = scmp.eq.s32.totalorder %s20, 0
      %p55 = por %p53, %p54
      %p56 = scmp.ne.s32.totalorder %s42, %s43
      %p57 = scmp.eq.s32.totalorder %s21, 1
      %p58 = por %p56, %p57
      %p60 = scmp.ne.s32.totalorder %s43, %s59
      %p61 = scmp.eq.s32.totalorder %s21, 0
      %p62 = por %p60, %p61
      %s63 = ssub.s32 %s22, %s34
      %p64 = scmp.eq.s32.totalorder %s63, 0
      %s66 = sadd.s32 %s65, 1
      %s67 = scalar_select %p64, %s65, %s66
      %p70 = pneg %p64
      %p71 = scmp.eq.s32.totalorder %s15, 1
      %p72 = por %p70, %p71
      %p73 = scmp.ne.s32.totalorder %s65, %s68
      %p74 = scmp.eq.s32.totalorder %s15, 0
      %p75 = por %p73, %p74
      %p76 = scmp.ne.s32.totalorder %s65, %s68
      %p77 = scmp.eq.s32.totalorder %s20, 1
      %p78 = por %p76, %p77
      %p79 = scmp.ne.s32.totalorder %s68, %s69
      %p80 = scmp.eq.s32.totalorder %s20, 0
      %p81 = por %p79, %p80
      %p82 = scmp.ne.s32.totalorder %s68, %s69
      %p83 = scmp.eq.s32.totalorder %s21, 1
      %p84 = por %p82, %p83
      %p86 = scmp.ne.s32.totalorder %s69, %s85
      %p87 = scmp.eq.s32.totalorder %s21, 0
      %p88 = por %p86, %p87
      %s89 = ssub.s32 %s23, %s30
      %p90 = scmp.eq.s32.totalorder %s89, 0
      %s92 = sadd.s32 %s91, 1
      %s93 = scalar_select %p90, %s91, %s92
      %p96 = pneg %p90
      %p97 = scmp.eq.s32.totalorder %s15, 1
      %p98 = por %p96, %p97
      %p99 = scmp.ne.s32.totalorder %s91, %s94
      %p100 = scmp.eq.s32.totalorder %s15, 0
      %p101 = por %p99, %p100
      %p102 = scmp.ne.s32.totalorder %s91, %s94
      %p103 = scmp.eq.s32.totalorder %s20, 1
      %p104 = por %p102, %p103
      %p105 = scmp.ne.s32.totalorder %s94, %s95
      %p106 = scmp.eq.s32.totalorder %s20, 0
      %p107 = por %p105, %p106
      %p108 = scmp.ne.s32.totalorder %s94, %s95
      %p109 = scmp.eq.s32.totalorder %s21, 1
      %p110 = por %p108, %p109
      %p112 = scmp.ne.s32.totalorder %s95, %s111
      %p113 = scmp.eq.s32.totalorder %s21, 0
      %p114 = por %p112, %p113
      %s115 = ssub.s32 %s22, %s34
      %s116 = ssub.s32 %s23, %s30
      %s117 = sor.u32 %s115, %s116
      %p118 = scmp.eq.s32.totalorder %s117, 0
      %s120 = sadd.s32 %s119, 1
      %s121 = scalar_select %p118, %s119, %s120
      %p124 = pneg %p118
      %p125 = scmp.eq.s32.totalorder %s15, 1
      %p126 = por %p124, %p125
      %p127 = scmp.ne.s32.totalorder %s119, %s122
      %p128 = scmp.eq.s32.totalorder %s15, 0
      %p129 = por %p127, %p128
      %p130 = scmp.ne.s32.totalorder %s119, %s122
      %p131 = scmp.eq.s32.totalorder %s20, 1
      %p132 = por %p130, %p131
      %p133 = scmp.ne.s32.totalorder %s122, %s123
      %p134 = scmp.eq.s32.totalorder %s20, 0
      %p135 = por %p133, %p134
      %p136 = scmp.ne.s32.totalorder %s122, %s123
      %p137 = scmp.eq.s32.totalorder %s21, 1
      %p138 = por %p136, %p137
      %p140 = scmp.ne.s32.totalorder %s123, %s139
      %p141 = scmp.eq.s32.totalorder %s21, 0
      %p142 = por %p140, %p141
      %p143 = scmp.le.s32.totalorder 1, %s15
      %p144 = scmp.lt.s32.totalorder %s15, 3
      %p145 = pnand %p143, %p144
      %p146 = pneg %p145
      // Predicated region
      $region9: #{tpu_custom_call.1} parent=5 // pred_check
        _
      $region10: #{tpu_custom_call.1} parent=5 // pred_check_branch
        %148 = sbr.rel (%p145) target = $region12
      $region11: #{tpu_custom_call.1} parent=5 // pred_region
        %s149 = ssub.s32 %s15, 1
        // Predicated region
        $region13: #{tpu_custom_call.1} parent=11 // pred_check
          %p150 = pneg %p107
        $region14: #{tpu_custom_call.1} parent=11 // pred_check_branch
          %152 = sbr.rel (%p150) target = $region16
        $region15: #{tpu_custom_call.1} parent=11 // pred_region
          %p153 = scmp.lt.s32.totalorder %s25, 0
          %s154 = scalar_select %p153, %s25, 0
          %s155 = smul.addr %s154, 2
          %s156 = smul.addr %s155, 8
          %s157 = scalar_lea.vmem %s2, %s156
        $region16: #{tpu_custom_call.1} parent=11 // pred_fallthru
          _
      $region12: #{tpu_custom_call.1} parent=5 // pred_fallthru
        _
      %p158 = scmp.lt.s32.totalorder %s15, 2
      // Predicated region
      $region17: #{tpu_custom_call.1} parent=5 // pred_check
        %p159 = pneg %p158
      $region18: #{tpu_custom_call.1} parent=5 // pred_check_branch
        %161 = sbr.rel (%p159) target = $region20
      $region19: #{tpu_custom_call.1} parent=5 // pred_region
        // Predicated region
        $region21: #{tpu_custom_call.1} parent=19 // pred_check
          %p162 = pneg %p49
        $region22: #{tpu_custom_call.1} parent=19 // pred_check_branch
          %164 = sbr.rel (%p162) target = $region24
        $region23: #{tpu_custom_call.1} parent=19 // pred_region
          %p165 = scmp.lt.s32.totalorder %s22, 1
          %s166 = scalar_select %p165, %s22, 1
          %p167 = scmp.lt.s32.totalorder %s23, 0
          %s168 = scalar_select %p167, %s23, 0
          %s169 = sadd.s32 %s168, %s166
          %s170 = smul.addr %s169, 8
          %s171 = scalar_lea.vmem %s0, %s170
        $region24: #{tpu_custom_call.1} parent=19 // pred_fallthru
          _
        // Predicated region
        $region25: #{tpu_custom_call.1} parent=19 // pred_check
          %p172 = pneg %p75
        $region26: #{tpu_custom_call.1} parent=19 // pred_check_branch
          %174 = sbr.rel (%p172) target = $region28
        $region27: #{tpu_custom_call.1} parent=19 // pred_region
          %s175 = sand.u32 %s65, 1
          %s176 = scalar_lea.sflag [#allocation3], %s175
          %s177 = sand.u32 %s65, 1
          %s178 = smul.addr %s177, 4
          %s179 = scalar_lea.vmem [#allocation2], %s178
          %s181 = ssub.s32 64, 64
          %182 = vsyncadd %s176, %s181
          %s183 = smul.addr %s22, 64
          %s184 = scalar_lea.hbm %s1, %s183
          %s186 = sshll.u32 %s179, 4
          %s187 = int_to_ptr.vmem [resolvable:$true] %s186
          %189 = dma.hbm_to_vmem [thread:$0]  %s184, 64, %s187, %s176
        $region28: #{tpu_custom_call.1} parent=19 // pred_fallthru
          _
      $region20: #{tpu_custom_call.1} parent=5 // pred_fallthru
        _
      %p190 = scmp.le.s32.totalorder 1, %s15
      %p191 = scmp.lt.s32.totalorder %s15, 3
      %p192 = pnand %p190, %p191
      %p193 = pneg %p192
      // Predicated region
      $region29: #{tpu_custom_call.1} parent=5 // pred_check
        _
      $region30: #{tpu_custom_call.1} parent=5 // pred_check_branch
        %195 = sbr.rel (%p192) target = $region32
      $region31: #{tpu_custom_call.1} parent=5 // pred_region
        %s196 = ssub.s32 %s15, 1
        %s197 = sand.u32 %s68, 1
        %s198 = scalar_lea.sflag [#allocation3], %s197
        %s199 = sand.u32 %s68, 1
        %s200 = smul.addr %s199, 4
        %s201 = scalar_lea.vmem [#allocation2], %s200
        // Predicated region
        $region33: #{tpu_custom_call.1} parent=31 // pred_check
          %p202 = pneg %p81
        $region34: #{tpu_custom_call.1} parent=31 // pred_check_branch
          %204 = sbr.rel (%p202) target = $region36
        $region35: #{tpu_custom_call.1} parent=31 // pred_region
          %205 = dma.done %s198, 64
        $region36: #{tpu_custom_call.1} parent=31 // pred_fallthru
          _
        %p206 = scmp.lt.s32.totalorder %s24, 1
        %s207 = scalar_select %p206, %s24, 1
        %p208 = scmp.lt.s32.totalorder %s25, 0
        %s209 = scalar_select %p208, %s25, 0
        %s210 = sadd.s32 %s209, %s207
        %s211 = smul.addr %s210, 8
        %s212 = scalar_lea.vmem %s0, %s211
        %p213 = pneg %p55
        %p214 = pneg %p52
        %s215 = sand.u32 %s68, 1
        %s216 = scalar_lea.sflag [#allocation3], %s215
        %s217 = sand.u32 %s68, 1
        %s218 = smul.addr %s217, 4
        %s219 = scalar_lea.vmem [#allocation2], %s218
        %p220 = pneg %p81
        %p221 = pneg %p78
        %p222 = scmp.lt.s32.totalorder %s25, 0
        %s223 = scalar_select %p222, %s25, 0
        %s224 = smul.addr %s223, 2
        %s225 = smul.addr %s224, 8
        %s226 = scalar_lea.vmem %s2, %s225
        %p227 = pneg %p107
        %p228 = pneg %p104
        %p229 = pneg %p135
        %p230 = pneg %p132
        %s231 = sand.u32 %s122, 1
        %s232 = scalar_lea.sflag [#allocation4], %s231
        %s233 = sand.u32 %s122, 1
        %s234 = smul.addr %s233, 8
        %s235 = scalar_lea.vmem [#allocation5], %s234
        %p236 = scmp.lt.s32.totalorder %s24, 1
        %s237 = scalar_select %p236, %s24, 1
        %p238 = scmp.lt.s32.totalorder %s25, 0
        %s239 = scalar_select %p238, %s25, 0
        %s240 = sadd.s32 %s239, %s237
        %s241 = smul.addr %s240, 8
        %s242 = scalar_lea.vmem %s0, %s241
        %p243 = scmp.lt.s32.totalorder %s25, 0
        %s244 = scalar_select %p243, %s25, 0
        %s245 = smul.addr %s244, 2
        %s246 = smul.addr %s245, 8
        %s247 = scalar_lea.vmem %s2, %s246
        %v248 = vld [vmem:[%s247] sm:$0xff]
        %v249 = vld [vmem:[%s247 + $0x8] sm:$0xff]
        %v250 = vlaneseq
        %v251 = vand.u32 %v250, 127
        %vm252 = vcmp.lt.s32.totalorder %v251, 16
        %v253 = vld [vmem:[%s242] sm:$0xff]
        %v254 = vld [vmem:[%s201] sm:$0xf]
        %255 = vadd.xlane.f32.xlu0 %v253
        %v256 = vpop.xlane.xlu0 %255
        %v257 = vmul.f32 %v256, 0.0625
        %v258 = vsub.f32 %v253, %v257
        %v259 = vmul.f32 %v258, %v258
        %v260 = vsel %vm252, %v259, 0.0
        %261 = vadd.xlane.f32.xlu0 %v260
        %v262 = vpop.xlane.xlu0 %261
        %v263 = vmul.f32 %v262, 0.0625
        %v264 = vadd.f32 %v263, 1e-05
        %v265 = vrsqrt.pop %v264
        %vm266 = vcmask 31744
        %v268 = vsel %vm266, %v248, 0
        %v271 = vsel %vm266, %v249, 0
        %vm273 = vcmask 1043456
        %v275 = vsel %vm273, %v254, 0
        %277 = vmatprep.subr.mxu0 0.0
        %278 = vmatpush1.msra.mxu0 %v275
        %279 = vmatprep.subr.mxu0 0.0
        %280 = vmatpush1.msra.mxu0 0.0
        %281 = vmatprep.subr.mxu0 0.0
        %282 = vmatpush1.msra.mxu0 0.0
        %283 = vmatprep.subr.mxu0 0.0
        %284 = vmatpush1.msra.mxu0 0.0
        %285 = vmatprep.subr.mxu0 0.0
        %286 = vmatpush1.msra.mxu0 0.0
        %287 = vmatprep.subr.mxu0 0.0
        %288 = vmatpush1.msra.mxu0 0.0
        %289 = vmatprep.subr.mxu0 0.0
        %290 = vmatpush1.msra.mxu0 0.0
        %291 = vmatprep.subr.mxu0 0.0
        %292 = vmatpush1.msra.mxu0 0.0
        %293 = vmatprep.subr.mxu0 0.0
        %294 = vmatpush1.msra.mxu0 0.0
        %295 = vmatprep.subr.mxu0 0.0
        %296 = vmatpush1.msra.mxu0 0.0
        %297 = vmatprep.subr.mxu0 0.0
        %298 = vmatpush1.msra.mxu0 0.0
        %299 = vmatprep.subr.mxu0 0.0
        %300 = vmatpush1.msra.mxu0 0.0
        %301 = vmatprep.subr.mxu0 0.0
        %302 = vmatpush1.msra.mxu0 0.0
        %303 = vmatprep.subr.mxu0 0.0
        %304 = vmatpush1.msra.mxu0 0.0
        %305 = vmatprep.subr.mxu0 0.0
        %306 = vmatpush1.msra.mxu0 0.0
        %307 = vmatprep.subr.mxu0 0.0
        %308 = vmatpush1.msra.mxu0 0.0
        %309 = vmatprep.subr.mxu0 0.0
        %310 = vmatpush1.msra.mxu0 0.0
        %311 = vmatprep.subr.mxu0 0.0
        %312 = vmatpush1.msra.mxu0 0.0
        %313 = vmatprep.subr.mxu0 0.0
        %314 = vmatpush1.msra.mxu0 0.0
        %315 = vmatprep.subr.mxu0 0.0
        %316 = vmatpush1.msra.mxu0 0.0
        %317 = vmatprep.subr.mxu0 0.0
        %318 = vmatpush1.msra.mxu0 0.0
        %319 = vmatprep.subr.mxu0 0.0
        %320 = vmatpush1.msra.mxu0 0.0
        %321 = vmatprep.subr.mxu0 0.0
        %322 = vmatpush1.msra.mxu0 0.0
        %323 = vmatprep.subr.mxu0 0.0
        %324 = vmatpush1.msra.mxu0 0.0
        %325 = vmatprep.subr.mxu0 0.0
        %326 = vmatpush1.msra.mxu0 0.0
        %327 = vmatprep.subr.mxu0 0.0
        %328 = vmatpush1.msra.mxu0 0.0
        %329 = vmatprep.subr.mxu0 0.0
        %330 = vmatpush1.msra.mxu0 0.0
        %331 = vmatprep.subr.mxu0 0.0
        %332 = vmatpush1.msra.mxu0 0.0
        %333 = vmatprep.subr.mxu0 0.0
        %334 = vmatpush1.msra.mxu0 0.0
        %335 = vmatprep.subr.mxu0 0.0
        %336 = vmatpush1.msra.mxu0 0.0
        %337 = vmatprep.subr.mxu0 0.0
        %338 = vmatpush1.msra.mxu0 0.0
        %339 = vmatprep.subr.mxu0 0.0
        %340 = vmatpush1.msra.mxu0 0.0
        %341 = vmatprep.mubr.f32.mxu0 0.0
        %342 = vmatmul.mubr.f32.gmra.mrb[0].mxu0 %v268
        %v343 = vpop.f32.mrb[0].mxu0
        %v344 = vadd.f32 0.0, %v343
        %v345 = vpop.f32.mrb[0].mxu0
        %346 = vmatprep.mubr.f32.mxu0 0.0
        %347 = vmatmul.mubr.f32.gmra.mrb[0].mxu0 %v271
        %v348 = vpop.f32.mrb[0].mxu0
        %v349 = vadd.f32 0.0, %v348
        %v350 = vpop.f32.mrb[0].mxu0
        %351 = vdwg.mxu0
        %v352 = vmul.f32 %v344, %v265
        %v353 = vmul.f32 %v352, %v258
        %v354 = vadd.f32 %v353, %v349
        %355 = vst [vmem:[%s235] sm:$0xff] %v354
        %s356 = sand.u32 %s122, 1
        %s357 = scalar_lea.sflag [#allocation4], %s356
        %s358 = sand.u32 %s122, 1
        %s359 = smul.addr %s358, 8
        %s360 = scalar_lea.vmem [#allocation5], %s359
        // Predicated region
        $region37: #{tpu_custom_call.1} parent=31 // pred_check
          %p361 = pneg %p132
        $region38: #{tpu_custom_call.1} parent=31 // pred_check_branch
          %363 = sbr.rel (%p361) target = $region40
        $region39: #{tpu_custom_call.1} parent=31 // pred_region
          %s365 = ssub.s32 128, 128
          %366 = vsyncadd %s357, %s365
          %s367 = sadd.s32 %s25, %s24
          %s368 = smul.addr %s367, 128
          %s369 = scalar_lea.hbm %s3, %s368
          %s371 = sshll.u32 %s360, 4
          %s372 = int_to_ptr.vmem [resolvable:$true] %s371
          %374 = dma.vmem_to_hbm [thread:$0]  %s372, 128, %s369, %s357
        $region40: #{tpu_custom_call.1} parent=31 // pred_fallthru
          _
      $region32: #{tpu_custom_call.1} parent=5 // pred_fallthru
        _
      %p375 = scmp.le.s32.totalorder 2, %s15
      // Predicated region
      $region41: #{tpu_custom_call.1} parent=5 // pred_check
        %p376 = pneg %p375
      $region42: #{tpu_custom_call.1} parent=5 // pred_check_branch
        %378 = sbr.rel (%p376) target = $region44
      $region43: #{tpu_custom_call.1} parent=5 // pred_region
        %s379 = ssub.s32 %s15, 2
        // Predicated region
        $region45: #{tpu_custom_call.1} parent=43 // pred_check
          %p380 = pneg %p138
        $region46: #{tpu_custom_call.1} parent=43 // pred_check_branch
          %382 = sbr.rel (%p380) target = $region48
        $region47: #{tpu_custom_call.1} parent=43 // pred_region
          %s383 = sand.u32 %s123, 1
          %s384 = scalar_lea.sflag [#allocation4], %s383
          %s385 = sand.u32 %s123, 1
          %s386 = smul.addr %s385, 8
          %s387 = scalar_lea.vmem [#allocation5], %s386
          %388 = dma.done %s384, 128
        $region48: #{tpu_custom_call.1} parent=43 // pred_fallthru
          _
      $region44: #{tpu_custom_call.1} parent=5 // pred_fallthru
        _
    $region6: #{tpu_custom_call.1} parent=1 // loop_footer
      %s19 = sadd.s32 1, %s15
    $region7: #{tpu_custom_call.1} parent=1 // loop_footer_branch
      %14 = sbr.rel target = $region3
    $region8: #{tpu_custom_call.1} parent=1 // loop_exit
      _
    %389 = vsyncpa [#allocation3], 1
    %s390 = scalar_lea.sflag [#allocation3], 1
    %391 = vsyncpa %s390, 1
    %392 = vsyncpa [#allocation4], 1
    %s393 = scalar_lea.sflag [#allocation4], 1
    %394 = vsyncpa %s393, 1

</llo_original>
